<compile_context>
chip_gen: v5e
topology: v5e:2x2
jax: 0.10.0
libtpu: 0.0.40
codegen_flags: <defaults>
</compile_context>

<pallas_src>
import functools

import numpy as np
import jax
import jax.numpy as jnp
from jax.experimental import pallas as pl
from jax.experimental.pallas import tpu as pltpu


_UNROLL_BLOCKS = 4          # fully unroll the backward slab loop when T//8 <= this
_CHUNK_LANES = 512          # compute-chunk width (bounds vreg live set per slab)
_FAST_PATH_LANES = 512      # GAE: single full-extent tile when B <= this
_NSTEP_FAST_LANES = 2048    # n-step: single full-extent tile when N <= this


@functools.lru_cache(maxsize=None)
def _vmem_capacity_bytes():
    """Per-core VMEM capacity (used to scale tile sizes per generation)."""
    try:
        return int(pltpu.get_tpu_info().vmem_capacity_bytes)
    except Exception:
        return 64 * 1024 * 1024  # conservative (v7x-sized) fallback


# ----------------------------------------------------------------------------
# Kernel 1: episodic (GAE) return -- mirrors _episodic_return, batched over
# independent trajectories on the lane axis.
# ----------------------------------------------------------------------------
def _gae_kernel(gamma, gae_lambda, CW, v_ref, rew_ref, done_ref, out_ref):
    T = v_ref.shape[0]
    TB = out_ref.shape[1]
    n_chunks = max(1, TB // CW)     # static; wrapper guarantees TB % CW == 0
    nb = T // 8                     # full 8-row slabs covering rows [0, 8*nb)
    r = T - 8 * nb                  # tail rows [8*nb, T), processed first

    def process_rows(base, count, col, gae):
        """Backward-scan rows [base, base+count) of lane chunk [col, col+CW)."""
        v_blk = v_ref[pl.ds(base, count), pl.ds(col, CW)]
        rew_blk = rew_ref[pl.ds(base, count), pl.ds(col, CW)]
        done_blk = done_ref[pl.ds(base, count), pl.ds(col, CW)]

        # ret0[j] = v[base + j - 1]; row base==0 wraps to v[T-1] (np.roll).
        if isinstance(base, int):
            prev_i = T - 1 if base == 0 else base - 1
        else:
            prev_i = jnp.where(base == 0, T - 1, base - 1)
        prev_row = v_ref[pl.ds(prev_i, 1), pl.ds(col, CW)]          # (1, CW)
        if count > 1:
            ret0_blk = jnp.concatenate([prev_row, v_blk[:count - 1, :]], axis=0)
        else:
            ret0_blk = prev_row

        m_blk = (1.0 - done_blk) * gamma
        delta_blk = rew_blk + v_blk * m_blk - ret0_blk
        mlam_blk = m_blk * gae_lambda

        rows = [None] * count
        for j in range(count - 1, -1, -1):
            gae = delta_blk[j:j + 1, :] + mlam_blk[j:j + 1, :] * gae
            rows[j] = ret0_blk[j:j + 1, :] + gae
        out_blk = rows[0] if count == 1 else jnp.concatenate(rows, axis=0)
        # store-as-you-go: one (count, CW) slab per block, nothing kept live.
        out_ref[pl.ds(base, count), pl.ds(col, CW)] = out_blk
        return gae

    for c in range(n_chunks):                       # static lane-chunk loop
        col = c * CW
        gae = jnp.zeros((1, CW), jnp.float32)
        if r > 0:                                   # ragged tail (highest rows)
            gae = process_rows(8 * nb, r, col, gae)
        if nb > 0:
            if nb <= _UNROLL_BLOCKS:                # short horizon: fully unroll
                for b in range(nb - 1, -1, -1):
                    gae = process_rows(8 * b, 8, col, gae)
            else:                                   # long horizon: fori_loop
                def body(i, g, _col=col):
                    base = pl.multiple_of(8 * (nb - 1 - i), 8)
                    return process_rows(base, 8, _col, g)
                gae = jax.lax.fori_loop(0, nb, body, gae)


@functools.partial(jax.jit, static_argnames=("gamma", "gae_lambda"))
def episodic_return_pallas(v_s_, rew, done, gamma=0.99, gae_lambda=0.95):
    """v_s_, rew, done: (T, B) arrays.  Returns GAE returns, (T, B) float32."""
    T, B = rew.shape
    cap = _vmem_capacity_bytes()
    f32 = lambda x: x.astype(jnp.float32)

    if B <= _FAST_PATH_LANES:
        # Small-batch fast path: one full-extent block, no padding, no slicing.
        kernel = functools.partial(_gae_kernel, float(gamma), float(gae_lambda), B)
        spec = pl.BlockSpec((T, B), lambda: (0, 0))
        footprint = 4 * T * B * 4
        vmem_limit = min(max(2 * footprint + (1 << 20), 8 << 20), cap * 3 // 4)
        return pl.pallas_call(
            kernel,
            out_shape=jax.ShapeDtypeStruct((T, B), jnp.float32),
            in_specs=[spec, spec, spec],
            out_specs=spec,
            compiler_params=pltpu.CompilerParams(vmem_limit_bytes=vmem_limit),
        )(f32(v_s_), f32(rew), f32(done))

    # Large-batch path: tile the lane axis.  Tile width targets ~VMEM/64 bytes
    # per array (scales down automatically on v7x), is capped at 4096 lanes,
    # and is kept <= half the batch so the "parallel" grid has >= 2 steps
    # (both v7x TensorCores get work).  The ragged tail block is handled by
    # the pl.cdiv grid -- no host-side jnp.pad / output slice.
    G = pl.cdiv(B, 128)
    tile_target = max(512 * 1024, cap // 64)
    g_vmem = max(1, tile_target // (T * 4 * 128))
    g_half = max(1, G // 2)
    g_tile = max(1, min(32, g_vmem, g_half))
    TB = g_tile * 128
    CW = min(_CHUNK_LANES, TB)
    if TB % CW:                       # keep DMA tile a whole number of chunks
        g_tile = (g_tile // 4) * 4
        TB = g_tile * 128
        CW = min(_CHUNK_LANES, TB)
    grid_n = pl.cdiv(B, TB)

    kernel = functools.partial(_gae_kernel, float(gamma), float(gae_lambda), CW)
    spec = pl.BlockSpec((T, TB), lambda b: (0, b))
    footprint = 4 * 2 * T * TB * 4    # 4 arrays, double-buffered, f32
    vmem_limit = min(max(2 * footprint + (1 << 20), 8 << 20), cap * 3 // 4)

    return pl.pallas_call(
        kernel,
        out_shape=jax.ShapeDtypeStruct((T, B), jnp.float32),
        grid=(grid_n,),
        in_specs=[spec, spec, spec],
        out_specs=spec,
        compiler_params=pltpu.CompilerParams(
            dimension_semantics=("parallel",),
            vmem_limit_bytes=vmem_limit),
    )(f32(v_s_), f32(rew), f32(done))


# ----------------------------------------------------------------------------
# Kernel 2: n-step return -- mirrors _nstep_return.  The replay-buffer gather
# stays XLA glue (single gather, single packed stream); the recurrence,
# masking and the final blend run inside the kernel with no divide / pow.
# ----------------------------------------------------------------------------
def _nstep_kernel(gamma, n_step, mean, inv_std, packed_ref, out_ref):
    rew = packed_ref[0:n_step, :]                   # gathered rew rows
    done = packed_ref[n_step:2 * n_step, :]         # gathered done rows
    tq = packed_ref[2 * n_step:2 * n_step + 1, :]   # target_q row (1, TN)

    returns = jnp.zeros(tq.shape, jnp.float32)
    terminated = jnp.zeros(tq.shape, jnp.bool_)
    # n_step is a static Python int -> unrolled, all vreg-resident.
    for n in range(n_step - 1, -1, -1):
        mask = done[n:n + 1, :] > 0.0
        terminated = jnp.logical_or(terminated, mask)
        returns = jnp.where(mask, 0.0, returns)
        returns = (rew[n:n + 1, :] - mean) * inv_std + gamma * returns

    # gammas == n_step exactly when no done fired; then gamma**gammas is the
    # compile-time constant gamma**n_step.  Otherwise target_q is zeroed.
    out_ref[...] = jnp.where(terminated, returns,
                             tq * (gamma ** n_step) + returns)


@functools.partial(jax.jit, static_argnames=("gamma", "n_step", "mean", "std"))
def nstep_return_pallas(rew, done, target_q, indice, gamma=0.99, n_step=3,
                        mean=0.0, std=1.0):
    """rew/done: (buf_len,), target_q/indice: (N,).  Returns (N,) float32."""
    buf_len = rew.shape[0]
    N = indice.shape[0]

    # glue: one gather building a single packed (2*n_step+1, N) input
    # (rew windows | done windows | target_q).  No lane padding needed.
    idx = indice.astype(jnp.int32)
    now = (idx[None, :] + jnp.arange(n_step, dtype=jnp.int32)[:, None]) % buf_len
    packed = jnp.concatenate(
        [rew.astype(jnp.float32)[now],
         done.astype(jnp.float32)[now],
         target_q.astype(jnp.float32)[None, :]], axis=0)    # (2n+1, N)
    R = 2 * n_step + 1

    kernel = functools.partial(_nstep_kernel, float(gamma), int(n_step),
                               float(mean), float(1.0 / std))

    if N <= _NSTEP_FAST_LANES:
        # Fast path: one full-extent block, no padding / slicing.
        out = pl.pallas_call(
            kernel,
            out_shape=jax.ShapeDtypeStruct((1, N), jnp.float32),
            in_specs=[pl.BlockSpec((R, N), lambda: (0, 0))],
            out_specs=pl.BlockSpec((1, N), lambda: (0, 0)),
        )(packed)
        return out[0]

    TN = 1024
    out = pl.pallas_call(
        kernel,
        out_shape=jax.ShapeDtypeStruct((1, N), jnp.float32),
        grid=(pl.cdiv(N, TN),),
        in_specs=[pl.BlockSpec((R, TN), lambda j: (0, j))],
        out_specs=pl.BlockSpec((1, TN), lambda j: (0, j)),
        compiler_params=pltpu.CompilerParams(
            dimension_semantics=("parallel",)),
    )(packed)
    return out[0]


# ----------------------------------------------------------------------------
# numpy references (direct transcriptions of the numba kernels)
# ----------------------------------------------------------------------------
def _episodic_return_ref(v_s_, rew, done, gamma, gae_lambda):
    """Column-batched transcription of _episodic_return (each column is an
    independent trajectory; identical to applying the 1-D kernel per column)."""
    v_s_ = v_s_.astype(np.float64)
    rew = rew.astype(np.float64)
    done = done.astype(np.float64)
    returns = np.roll(v_s_, 1, axis=0)
    m = (1.0 - done) * gamma
    delta = rew + v_s_ * m - returns
    m = m * gae_lambda
    gae = np.zeros(rew.shape[1], np.float64)
    for i in range(rew.shape[0] - 1, -1, -1):
        gae = delta[i] + m[i] * gae
        returns[i] = returns[i] + gae
    return returns


def _nstep_return_ref(rew, done, target_q, indice, gamma, n_step, buf_len,
                      mean, std):
    target_q = target_q.astype(np.float64).copy()
    returns = np.zeros(indice.shape)
    gammas = np.full(indice.shape, n_step)
    for n in range(n_step - 1, -1, -1):
        now = (indice + n) % buf_len
        gammas[done[now] > 0] = n
        returns[done[now] > 0] = 0.0
        returns = (rew[now] - mean) / std + gamma * returns
    target_q[gammas != n_step] = 0.0
    target_q = target_q * gamma ** gammas + returns
    return target_q


if __name__ == "__main__":
    key = jax.random.PRNGKey(0)
    gamma, lam = 0.99, 0.95

    # --- episodic (GAE) returns ---
    # cases: fast-path unrolled / ragged T / fori_loop horizon / tiled grid
    gae_cases = [(16, 8), (19, 5), (72, 16), (24, 700)]
    for case_i, (T, B) in enumerate(gae_cases):
        k = jax.random.fold_in(key, case_i)
        k1, k2, k3 = jax.random.split(k, 3)
        v_s_ = jax.random.normal(k1, (T, B), jnp.float32)
        rew = jax.random.normal(k2, (T, B), jnp.float32)
        done = (jax.random.uniform(k3, (T, B)) < 0.2).astype(jnp.float32)

        out = jax.block_until_ready(
            episodic_return_pallas(v_s_, rew, done, gamma=gamma, gae_lambda=lam))
        ref = _episodic_return_ref(np.array(v_s_), np.array(rew),
                                   np.array(done), gamma, lam)
        assert np.allclose(np.array(out), ref, rtol=1e-3, atol=1e-3), \
            f"GAE kernel mismatch (T={T}, B={B})"

    # --- n-step returns ---
    # cases: fast path / tiled grid with ragged tail + reward normalization
    nstep_cases = [(64, 16, 3, 0.0, 1.0), (4096, 2500, 4, 0.25, 2.0)]
    for case_i, (buf_len, N, n_step, mean, std) in enumerate(nstep_cases):
        k = jax.random.fold_in(key, 100 + case_i)
        k1, k2, k3, k4 = jax.random.split(k, 4)
        b_rew = jax.random.normal(k1, (buf_len,), jnp.float32)
        b_done = (jax.random.uniform(k2, (buf_len,)) < 0.15).astype(jnp.float32)
        target_q = jax.random.normal(k3, (N,), jnp.float32)
        indice = jax.random.randint(k4, (N,), 0, buf_len, dtype=jnp.int32)

        out = jax.block_until_ready(
            nstep_return_pallas(b_rew, b_done, target_q, indice,
                                gamma=gamma, n_step=n_step, mean=mean, std=std))
        ref = _nstep_return_ref(np.array(b_rew), np.array(b_done),
                                np.array(target_q), np.array(indice),
                                gamma, n_step, buf_len, mean, std)
        assert np.allclose(np.array(out), ref, rtol=1e-3, atol=1e-3), \
            f"n-step kernel mismatch (buf_len={buf_len}, N={N}, n_step={n_step})"

    # TODO(synk): replay-buffer sampling / Batch plumbing and the abstract
    # forward()/learn() have no tensor math and are not translated.
    print("KERNEL_OK")
</pallas_src>

<mosaic_0001>
module attributes {stable_mosaic.version = 11 : i64} {
  func.func @_gae_kernel(%arg0: memref<16x8xf32, #tpu.memory_space<vmem>>, %arg1: memref<16x8xf32, #tpu.memory_space<vmem>>, %arg2: memref<16x8xf32, #tpu.memory_space<vmem>>, %arg3: memref<16x8xf32, #tpu.memory_space<vmem>>) attributes {dimension_semantics = [], scalar_prefetch = 0 : i64, scratch_operands = 0 : i64, tpu.core_type = #tpu.core_type<tc>} {
    %cst = arith.constant 0.000000e+00 : f32
    %0 = vector.broadcast %cst : f32 to vector<1x8xf32>
    %c8 = arith.constant 8 : index
    %c0 = arith.constant 0 : index
    %1 = vector.load %arg0[%c8, %c0] : memref<16x8xf32, #tpu.memory_space<vmem>>, vector<8x8xf32>
    %c8_0 = arith.constant 8 : index
    %c0_1 = arith.constant 0 : index
    %2 = vector.load %arg1[%c8_0, %c0_1] : memref<16x8xf32, #tpu.memory_space<vmem>>, vector<8x8xf32>
    %c8_2 = arith.constant 8 : index
    %c0_3 = arith.constant 0 : index
    %3 = vector.load %arg2[%c8_2, %c0_3] : memref<16x8xf32, #tpu.memory_space<vmem>>, vector<8x8xf32>
    %c7 = arith.constant 7 : index
    %c0_4 = arith.constant 0 : index
    %4 = vector.load %arg0[%c7, %c0_4] : memref<16x8xf32, #tpu.memory_space<vmem>>, vector<1x8xf32>
    %5 = vector.extract_strided_slice %1 {offsets = [0, 0], sizes = [7, 8], strides = [1, 1]} : vector<8x8xf32> to vector<7x8xf32>
    %6 = tpu.concatenate %4, %5 in 0 : vector<1x8xf32>, vector<7x8xf32> -> vector<8x8xf32>
    %cst_5 = arith.constant 1.000000e+00 : f32
    %7 = vector.broadcast %cst_5 : f32 to vector<8x8xf32>
    %8 = arith.subf %7, %3 : vector<8x8xf32>
    %cst_6 = arith.constant 9.900000e-01 : f32
    %9 = vector.broadcast %cst_6 : f32 to vector<8x8xf32>
    %10 = arith.mulf %8, %9 : vector<8x8xf32>
    %11 = arith.mulf %1, %10 : vector<8x8xf32>
    %12 = arith.addf %2, %11 : vector<8x8xf32>
    %13 = arith.subf %12, %6 : vector<8x8xf32>
    %cst_7 = arith.constant 0.949999988 : f32
    %14 = vector.broadcast %cst_7 : f32 to vector<8x8xf32>
    %15 = arith.mulf %10, %14 : vector<8x8xf32>
    %16 = vector.extract_strided_slice %13 {offsets = [7, 0], sizes = [1, 8], strides = [1, 1]} : vector<8x8xf32> to vector<1x8xf32>
    %17 = vector.extract_strided_slice %15 {offsets = [7, 0], sizes = [1, 8], strides = [1, 1]} : vector<8x8xf32> to vector<1x8xf32>
    %18 = arith.mulf %17, %0 : vector<1x8xf32>
    %19 = arith.addf %16, %18 : vector<1x8xf32>
    %20 = vector.extract_strided_slice %6 {offsets = [7, 0], sizes = [1, 8], strides = [1, 1]} : vector<8x8xf32> to vector<1x8xf32>
    %21 = arith.addf %20, %19 : vector<1x8xf32>
    %22 = vector.extract_strided_slice %13 {offsets = [6, 0], sizes = [1, 8], strides = [1, 1]} : vector<8x8xf32> to vector<1x8xf32>
    %23 = vector.extract_strided_slice %15 {offsets = [6, 0], sizes = [1, 8], strides = [1, 1]} : vector<8x8xf32> to vector<1x8xf32>
    %24 = arith.mulf %23, %19 : vector<1x8xf32>
    %25 = arith.addf %22, %24 : vector<1x8xf32>
    %26 = vector.extract_strided_slice %6 {offsets = [6, 0], sizes = [1, 8], strides = [1, 1]} : vector<8x8xf32> to vector<1x8xf32>
    %27 = arith.addf %26, %25 : vector<1x8xf32>
    %28 = vector.extract_strided_slice %13 {offsets = [5, 0], sizes = [1, 8], strides = [1, 1]} : vector<8x8xf32> to vector<1x8xf32>
    %29 = vector.extract_strided_slice %15 {offsets = [5, 0], sizes = [1, 8], strides = [1, 1]} : vector<8x8xf32> to vector<1x8xf32>
    %30 = arith.mulf %29, %25 : vector<1x8xf32>
    %31 = arith.addf %28, %30 : vector<1x8xf32>
    %32 = vector.extract_strided_slice %6 {offsets = [5, 0], sizes = [1, 8], strides = [1, 1]} : vector<8x8xf32> to vector<1x8xf32>
    %33 = arith.addf %32, %31 : vector<1x8xf32>
    %34 = vector.extract_strided_slice %13 {offsets = [4, 0], sizes = [1, 8], strides = [1, 1]} : vector<8x8xf32> to vector<1x8xf32>
    %35 = vector.extract_strided_slice %15 {offsets = [4, 0], sizes = [1, 8], strides = [1, 1]} : vector<8x8xf32> to vector<1x8xf32>
    %36 = arith.mulf %35, %31 : vector<1x8xf32>
    %37 = arith.addf %34, %36 : vector<1x8xf32>
    %38 = vector.extract_strided_slice %6 {offsets = [4, 0], sizes = [1, 8], strides = [1, 1]} : vector<8x8xf32> to vector<1x8xf32>
    %39 = arith.addf %38, %37 : vector<1x8xf32>
    %40 = vector.extract_strided_slice %13 {offsets = [3, 0], sizes = [1, 8], strides = [1, 1]} : vector<8x8xf32> to vector<1x8xf32>
    %41 = vector.extract_strided_slice %15 {offsets = [3, 0], sizes = [1, 8], strides = [1, 1]} : vector<8x8xf32> to vector<1x8xf32>
    %42 = arith.mulf %41, %37 : vector<1x8xf32>
    %43 = arith.addf %40, %42 : vector<1x8xf32>
    %44 = vector.extract_strided_slice %6 {offsets = [3, 0], sizes = [1, 8], strides = [1, 1]} : vector<8x8xf32> to vector<1x8xf32>
    %45 = arith.addf %44, %43 : vector<1x8xf32>
    %46 = vector.extract_strided_slice %13 {offsets = [2, 0], sizes = [1, 8], strides = [1, 1]} : vector<8x8xf32> to vector<1x8xf32>
    %47 = vector.extract_strided_slice %15 {offsets = [2, 0], sizes = [1, 8], strides = [1, 1]} : vector<8x8xf32> to vector<1x8xf32>
    %48 = arith.mulf %47, %43 : vector<1x8xf32>
    %49 = arith.addf %46, %48 : vector<1x8xf32>
    %50 = vector.extract_strided_slice %6 {offsets = [2, 0], sizes = [1, 8], strides = [1, 1]} : vector<8x8xf32> to vector<1x8xf32>
    %51 = arith.addf %50, %49 : vector<1x8xf32>
    %52 = vector.extract_strided_slice %13 {offsets = [1, 0], sizes = [1, 8], strides = [1, 1]} : vector<8x8xf32> to vector<1x8xf32>
    %53 = vector.extract_strided_slice %15 {offsets = [1, 0], sizes = [1, 8], strides = [1, 1]} : vector<8x8xf32> to vector<1x8xf32>
    %54 = arith.mulf %53, %49 : vector<1x8xf32>
    %55 = arith.addf %52, %54 : vector<1x8xf32>
    %56 = vector.extract_strided_slice %6 {offsets = [1, 0], sizes = [1, 8], strides = [1, 1]} : vector<8x8xf32> to vector<1x8xf32>
    %57 = arith.addf %56, %55 : vector<1x8xf32>
    %58 = vector.extract_strided_slice %13 {offsets = [0, 0], sizes = [1, 8], strides = [1, 1]} : vector<8x8xf32> to vector<1x8xf32>
    %59 = vector.extract_strided_slice %15 {offsets = [0, 0], sizes = [1, 8], strides = [1, 1]} : vector<8x8xf32> to vector<1x8xf32>
    %60 = arith.mulf %59, %55 : vector<1x8xf32>
    %61 = arith.addf %58, %60 : vector<1x8xf32>
    %62 = vector.extract_strided_slice %6 {offsets = [0, 0], sizes = [1, 8], strides = [1, 1]} : vector<8x8xf32> to vector<1x8xf32>
    %63 = arith.addf %62, %61 : vector<1x8xf32>
    %64 = tpu.concatenate %63, %57, %51, %45, %39, %33, %27, %21 in 0 : vector<1x8xf32>, vector<1x8xf32>, vector<1x8xf32>, vector<1x8xf32>, vector<1x8xf32>, vector<1x8xf32>, vector<1x8xf32>, vector<1x8xf32> -> vector<8x8xf32>
    %c8_8 = arith.constant 8 : index
    %c0_9 = arith.constant 0 : index
    %65 = vector.load %arg3[%c8_8, %c0_9] : memref<16x8xf32, #tpu.memory_space<vmem>>, vector<8x8xf32>
    tpu.vector_store %arg3[%c8_8, %c0_9], %64 {strides = array<i32>} : memref<16x8xf32, #tpu.memory_space<vmem>>, vector<8x8xf32>,
    %c0_10 = arith.constant 0 : index
    %c0_11 = arith.constant 0 : index
    %66 = vector.load %arg0[%c0_10, %c0_11] : memref<16x8xf32, #tpu.memory_space<vmem>>, vector<8x8xf32>
    %c0_12 = arith.constant 0 : index
    %c0_13 = arith.constant 0 : index
    %67 = vector.load %arg1[%c0_12, %c0_13] : memref<16x8xf32, #tpu.memory_space<vmem>>, vector<8x8xf32>
    %c0_14 = arith.constant 0 : index
    %c0_15 = arith.constant 0 : index
    %68 = vector.load %arg2[%c0_14, %c0_15] : memref<16x8xf32, #tpu.memory_space<vmem>>, vector<8x8xf32>
    %c15 = arith.constant 15 : index
    %c0_16 = arith.constant 0 : index
    %69 = vector.load %arg0[%c15, %c0_16] : memref<16x8xf32, #tpu.memory_space<vmem>>, vector<1x8xf32>
    %70 = vector.extract_strided_slice %66 {offsets = [0, 0], sizes = [7, 8], strides = [1, 1]} : vector<8x8xf32> to vector<7x8xf32>
    %71 = tpu.concatenate %69, %70 in 0 : vector<1x8xf32>, vector<7x8xf32> -> vector<8x8xf32>
    %cst_17 = arith.constant 1.000000e+00 : f32
    %72 = vector.broadcast %cst_17 : f32 to vector<8x8xf32>
    %73 = arith.subf %72, %68 : vector<8x8xf32>
    %cst_18 = arith.constant 9.900000e-01 : f32
    %74 = vector.broadcast %cst_18 : f32 to vector<8x8xf32>
    %75 = arith.mulf %73, %74 : vector<8x8xf32>
    %76 = arith.mulf %66, %75 : vector<8x8xf32>
    %77 = arith.addf %67, %76 : vector<8x8xf32>
    %78 = arith.subf %77, %71 : vector<8x8xf32>
    %cst_19 = arith.constant 0.949999988 : f32
    %79 = vector.broadcast %cst_19 : f32 to vector<8x8xf32>
    %80 = arith.mulf %75, %79 : vector<8x8xf32>
    %81 = vector.extract_strided_slice %78 {offsets = [7, 0], sizes = [1, 8], strides = [1, 1]} : vector<8x8xf32> to vector<1x8xf32>
    %82 = vector.extract_strided_slice %80 {offsets = [7, 0], sizes = [1, 8], strides = [1, 1]} : vector<8x8xf32> to vector<1x8xf32>
    %83 = arith.mulf %82, %61 : vector<1x8xf32>
    %84 = arith.addf %81, %83 : vector<1x8xf32>
    %85 = vector.extract_strided_slice %71 {offsets = [7, 0], sizes = [1, 8], strides = [1, 1]} : vector<8x8xf32> to vector<1x8xf32>
    %86 = arith.addf %85, %84 : vector<1x8xf32>
    %87 = vector.extract_strided_slice %78 {offsets = [6, 0], sizes = [1, 8], strides = [1, 1]} : vector<8x8xf32> to vector<1x8xf32>
    %88 = vector.extract_strided_slice %80 {offsets = [6, 0], sizes = [1, 8], strides = [1, 1]} : vector<8x8xf32> to vector<1x8xf32>
    %89 = arith.mulf %88, %84 : vector<1x8xf32>
    %90 = arith.addf %87, %89 : vector<1x8xf32>
    %91 = vector.extract_strided_slice %71 {offsets = [6, 0], sizes = [1, 8], strides = [1, 1]} : vector<8x8xf32> to vector<1x8xf32>
    %92 = arith.addf %91, %90 : vector<1x8xf32>
    %93 = vector.extract_strided_slice %78 {offsets = [5, 0], sizes = [1, 8], strides = [1, 1]} : vector<8x8xf32> to vector<1x8xf32>
    %94 = vector.extract_strided_slice %80 {offsets = [5, 0], sizes = [1, 8], strides = [1, 1]} : vector<8x8xf32> to vector<1x8xf32>
    %95 = arith.mulf %94, %90 : vector<1x8xf32>
    %96 = arith.addf %93, %95 : vector<1x8xf32>
    %97 = vector.extract_strided_slice %71 {offsets = [5, 0], sizes = [1, 8], strides = [1, 1]} : vector<8x8xf32> to vector<1x8xf32>
    %98 = arith.addf %97, %96 : vector<1x8xf32>
    %99 = vector.extract_strided_slice %78 {offsets = [4, 0], sizes = [1, 8], strides = [1, 1]} : vector<8x8xf32> to vector<1x8xf32>
    %100 = vector.extract_strided_slice %80 {offsets = [4, 0], sizes = [1, 8], strides = [1, 1]} : vector<8x8xf32> to vector<1x8xf32>
    %101 = arith.mulf %100, %96 : vector<1x8xf32>
    %102 = arith.addf %99, %101 : vector<1x8xf32>
    %103 = vector.extract_strided_slice %71 {offsets = [4, 0], sizes = [1, 8], strides = [1, 1]} : vector<8x8xf32> to vector<1x8xf32>
    %104 = arith.addf %103, %102 : vector<1x8xf32>
    %105 = vector.extract_strided_slice %78 {offsets = [3, 0], sizes = [1, 8], strides = [1, 1]} : vector<8x8xf32> to vector<1x8xf32>
    %106 = vector.extract_strided_slice %80 {offsets = [3, 0], sizes = [1, 8], strides = [1, 1]} : vector<8x8xf32> to vector<1x8xf32>
    %107 = arith.mulf %106, %102 : vector<1x8xf32>
    %108 = arith.addf %105, %107 : vector<1x8xf32>
    %109 = vector.extract_strided_slice %71 {offsets = [3, 0], sizes = [1, 8], strides = [1, 1]} : vector<8x8xf32> to vector<1x8xf32>
    %110 = arith.addf %109, %108 : vector<1x8xf32>
    %111 = vector.extract_strided_slice %78 {offsets = [2, 0], sizes = [1, 8], strides = [1, 1]} : vector<8x8xf32> to vector<1x8xf32>
    %112 = vector.extract_strided_slice %80 {offsets = [2, 0], sizes = [1, 8], strides = [1, 1]} : vector<8x8xf32> to vector<1x8xf32>
    %113 = arith.mulf %112, %108 : vector<1x8xf32>
    %114 = arith.addf %111, %113 : vector<1x8xf32>
    %115 = vector.extract_strided_slice %71 {offsets = [2, 0], sizes = [1, 8], strides = [1, 1]} : vector<8x8xf32> to vector<1x8xf32>
    %116 = arith.addf %115, %114 : vector<1x8xf32>
    %117 = vector.extract_strided_slice %78 {offsets = [1, 0], sizes = [1, 8], strides = [1, 1]} : vector<8x8xf32> to vector<1x8xf32>
    %118 = vector.extract_strided_slice %80 {offsets = [1, 0], sizes = [1, 8], strides = [1, 1]} : vector<8x8xf32> to vector<1x8xf32>
    %119 = arith.mulf %118, %114 : vector<1x8xf32>
    %120 = arith.addf %117, %119 : vector<1x8xf32>
    %121 = vector.extract_strided_slice %71 {offsets = [1, 0], sizes = [1, 8], strides = [1, 1]} : vector<8x8xf32> to vector<1x8xf32>
    %122 = arith.addf %121, %120 : vector<1x8xf32>
    %123 = vector.extract_strided_slice %78 {offsets = [0, 0], sizes = [1, 8], strides = [1, 1]} : vector<8x8xf32> to vector<1x8xf32>
    %124 = vector.extract_strided_slice %80 {offsets = [0, 0], sizes = [1, 8], strides = [1, 1]} : vector<8x8xf32> to vector<1x8xf32>
    %125 = arith.mulf %124, %120 : vector<1x8xf32>
    %126 = arith.addf %123, %125 : vector<1x8xf32>
    %127 = vector.extract_strided_slice %71 {offsets = [0, 0], sizes = [1, 8], strides = [1, 1]} : vector<8x8xf32> to vector<1x8xf32>
    %128 = arith.addf %127, %126 : vector<1x8xf32>
    %129 = tpu.concatenate %128, %122, %116, %110, %104, %98, %92, %86 in 0 : vector<1x8xf32>, vector<1x8xf32>, vector<1x8xf32>, vector<1x8xf32>, vector<1x8xf32>, vector<1x8xf32>, vector<1x8xf32>, vector<1x8xf32> -> vector<8x8xf32>
    %c0_20 = arith.constant 0 : index
    %c0_21 = arith.constant 0 : index
    %130 = vector.load %arg3[%c0_20, %c0_21] : memref<16x8xf32, #tpu.memory_space<vmem>>, vector<8x8xf32>
    tpu.vector_store %arg3[%c0_20, %c0_21], %129 {strides = array<i32>} : memref<16x8xf32, #tpu.memory_space<vmem>>, vector<8x8xf32>,
    return
  }
}

</mosaic_0001>

<llo_original>
// kernel: episodic_return_pallas.1
$region0: #{episodic_return_pallas.1}
  #allocation0 [shape = 'u32[]', space=smem, size = 0x4, offset = 0x4, fixed_abs, tag = 'smem constant byte address 0x4 - core index']
  #allocation1 [shape = 'u32[72,128]{1,0:T(1,128)}', space=vmem, size = 0x9000, scoped, tag = 'internal scratch']
  %s0 = inlined_call_operand.vmem [shape: f32[16,8], index: 0, kind: input, shape index: {}]
  %s1 = inlined_call_operand.vmem [shape: f32[16,8], index: 1, kind: input, shape index: {}]
  %s2 = inlined_call_operand.vmem [shape: f32[16,8], index: 2, kind: input, shape index: {}]
  %s3 = inlined_call_operand.vmem [shape: f32[16,8], index: 3, kind: output, shape index: {}]
  %s4 = sld [smem:[#allocation0]]
  $region22: #{episodic_return_pallas.1} parent=0
    _
  %s6 = ssub.s32 1, %s4
  %s7 = scalar_select 0, %s6, %s4
  // Predicated region
  $region2: #{episodic_return_pallas.1} parent=0 // pred_check
    _
  $region3: #{episodic_return_pallas.1} parent=0 // pred_check_branch
    %9 = sbr.rel (0) target = $region5
  $region4: #{episodic_return_pallas.1} parent=0 // pred_region
    _
  $region5: #{episodic_return_pallas.1} parent=0 // pred_fallthru
    _
  // Predicated region
  $region6: #{episodic_return_pallas.1} parent=0 // pred_check
    _
  $region7: #{episodic_return_pallas.1} parent=0 // pred_check_branch
    %11 = sbr.rel (0) target = $region9
  $region8: #{episodic_return_pallas.1} parent=0 // pred_region
    _
  $region9: #{episodic_return_pallas.1} parent=0 // pred_fallthru
    _
  // Predicated region
  $region10: #{episodic_return_pallas.1} parent=0 // pred_check
    _
  $region11: #{episodic_return_pallas.1} parent=0 // pred_check_branch
    %13 = sbr.rel (0) target = $region13
  $region12: #{episodic_return_pallas.1} parent=0 // pred_region
    _
  $region13: #{episodic_return_pallas.1} parent=0 // pred_fallthru
    _
  %v14 = vld [vmem:[%s0 + $0x8] sm:$0xff]
  %v15 = vld [vmem:[%s1 + $0x8] sm:$0xff]
  %v16 = vld [vmem:[%s2 + $0x8] sm:$0xff]
  %v17 = vld [vmem:[%s0 + $0x7] sm:$0x1]
  %v19 = vrot.slane %v14, 7
  %vm21 = vcmask 1040384
  %v22 = vsel %vm21, %v17, %v19
  %v23 = vsub.f32 1.0, %v16
  %v24 = vmul.f32 %v23, 0.99
  %v25 = vmul.f32 %v14, %v24
  %v26 = vadd.f32 %v15, %v25
  %v27 = vsub.f32 %v26, %v22
  %v28 = vmul.f32 %v24, 0.95
  %v29 = vmul.f32 %v28, 0.0
  %v30 = vadd.f32 %v27, %v29
  %v31 = vadd.f32 %v22, %v30
  %v33 = vrot.slane %v30, 1
  %v35 = vmul.f32 %v28, %v33
  %v36 = vadd.f32 %v27, %v35
  %v37 = vadd.f32 %v22, %v36
  %v39 = vrot.slane %v36, 1
  %v41 = vmul.f32 %v28, %v39
  %v42 = vadd.f32 %v27, %v41
  %v43 = vadd.f32 %v22, %v42
  %v45 = vrot.slane %v42, 1
  %v47 = vmul.f32 %v28, %v45
  %v48 = vadd.f32 %v27, %v47
  %v49 = vadd.f32 %v22, %v48
  %v51 = vrot.slane %v48, 1
  %v53 = vmul.f32 %v28, %v51
  %v54 = vadd.f32 %v27, %v53
  %v55 = vadd.f32 %v22, %v54
  %v57 = vrot.slane %v54, 1
  %v59 = vmul.f32 %v28, %v57
  %v60 = vadd.f32 %v27, %v59
  %v61 = vadd.f32 %v22, %v60
  %v63 = vrot.slane %v60, 1
  %v65 = vmul.f32 %v28, %v63
  %v66 = vadd.f32 %v27, %v65
  %v67 = vadd.f32 %v22, %v66
  %v69 = vrot.slane %v66, 1
  %v71 = vmul.f32 %v28, %v69
  %v72 = vadd.f32 %v27, %v71
  %v73 = vadd.f32 %v22, %v72
  %v74 = vsel %vm21, %v73, %v67
  %vm75 = vcmask 1041408
  %v76 = vsel %vm75, %v74, %v61
  %vm77 = vcmask 1042432
  %v78 = vsel %vm77, %v76, %v55
  %vm79 = vcmask 1043456
  %v80 = vsel %vm79, %v78, %v49
  %vm81 = vcmask 1044480
  %v82 = vsel %vm81, %v80, %v43
  %vm83 = vcmask 1045504
  %v84 = vsel %vm83, %v82, %v37
  %vm85 = vcmask 1046528
  %v86 = vsel %vm85, %v84, %v31
  %vm87 = vcmask 64512
  %88 = vst.msk [vmem:[%s3 + $0x8] sm:$0xff] %vm87, %v86
  %v89 = vld [vmem:[%s0] sm:$0xff]
  %v90 = vld [vmem:[%s1] sm:$0xff]
  %v91 = vld [vmem:[%s2] sm:$0xff]
  %v92 = vld [vmem:[%s0 + $0xf] sm:$0x1]
  %v94 = vrot.slane %v89, 7
  %v96 = vsel %vm21, %v92, %v94
  %v97 = vsub.f32 1.0, %v91
  %v98 = vmul.f32 %v97, 0.99
  %v99 = vmul.f32 %v89, %v98
  %v100 = vadd.f32 %v90, %v99
  %v101 = vsub.f32 %v100, %v96
  %v102 = vmul.f32 %v98, 0.95
  %v104 = vrot.slane %v72, 1
  %v106 = vmul.f32 %v102, %v104
  %v107 = vadd.f32 %v101, %v106
  %v108 = vadd.f32 %v96, %v107
  %v110 = vrot.slane %v107, 1
  %v112 = vmul.f32 %v102, %v110
  %v113 = vadd.f32 %v101, %v112
  %v114 = vadd.f32 %v96, %v113
  %v116 = vrot.slane %v113, 1
  %v118 = vmul.f32 %v102, %v116
  %v119 = vadd.f32 %v101, %v118
  %v120 = vadd.f32 %v96, %v119
  %v122 = vrot.slane %v119, 1
  %v124 = vmul.f32 %v102, %v122
  %v125 = vadd.f32 %v101, %v124
  %v126 = vadd.f32 %v96, %v125
  %v128 = vrot.slane %v125, 1
  %v130 = vmul.f32 %v102, %v128
  %v131 = vadd.f32 %v101, %v130
  %v132 = vadd.f32 %v96, %v131
  %v134 = vrot.slane %v131, 1
  %v136 = vmul.f32 %v102, %v134
  %v137 = vadd.f32 %v101, %v136
  %v138 = vadd.f32 %v96, %v137
  %v140 = vrot.slane %v137, 1
  %v142 = vmul.f32 %v102, %v140
  %v143 = vadd.f32 %v101, %v142
  %v144 = vadd.f32 %v96, %v143
  %v146 = vrot.slane %v143, 1
  %v148 = vmul.f32 %v102, %v146
  %v149 = vadd.f32 %v101, %v148
  %v150 = vadd.f32 %v96, %v149
  %v151 = vsel %vm21, %v150, %v144
  %v152 = vsel %vm75, %v151, %v138
  %v153 = vsel %vm77, %v152, %v132
  %v154 = vsel %vm79, %v153, %v126
  %v155 = vsel %vm81, %v154, %v120
  %v156 = vsel %vm83, %v155, %v114
  %v157 = vsel %vm85, %v156, %v108
  %158 = vst.msk [vmem:[%s3] sm:$0xff] %vm87, %v157
  // Predicated region
  $region14: #{episodic_return_pallas.1} parent=0 // pred_check
    _
  $region15: #{episodic_return_pallas.1} parent=0 // pred_check_branch
    %160 = sbr.rel (0) target = $region17
  $region16: #{episodic_return_pallas.1} parent=0 // pred_region
    _
  $region17: #{episodic_return_pallas.1} parent=0 // pred_fallthru
    _
  // Predicated region
  $region18: #{episodic_return_pallas.1} parent=0 // pred_check
    _
  $region19: #{episodic_return_pallas.1} parent=0 // pred_check_branch
    %162 = sbr.rel (0) target = $region21
  $region20: #{episodic_return_pallas.1} parent=0 // pred_region
    _
  $region21: #{episodic_return_pallas.1} parent=0 // pred_fallthru
    _

</llo_original>
